<compile_context>
chip_gen: v7x
topology: tpu7x:2x2x1
jax: 0.10.0
libtpu: 0.0.40
codegen_flags: <defaults>
</compile_context>

<pallas_src>
import functools

import jax
import jax.numpy as jnp
from jax.experimental import pallas as pl
from jax.experimental.pallas import tpu as pltpu

_ACT_DTYPE = jnp.bfloat16          # inter-layer activation / MXU input dtype


def _vmem_limit_bytes():
    """Generation-dependent VMEM budget: ~3/4 of the part's VMEM, capped at 100 MiB
    (v5e/v6e: 128 MiB -> 96 MiB, v7x: 64 MiB per TensorCore -> 48 MiB)."""
    cap = 64 * 1024 * 1024
    try:
        cap = int(getattr(pltpu.get_tpu_info(), "vmem_capacity_bytes", cap))
    except Exception:
        pass
    return min(cap * 3 // 4, 100 * 1024 * 1024)


_VMEM_LIMIT = _vmem_limit_bytes()


def _compiler_params(grid_rank):
    return pltpu.CompilerParams(
        dimension_semantics=("parallel",) * grid_rank,
        vmem_limit_bytes=_VMEM_LIMIT)


def _cout_tile(cout):
    # 128-wide Cout tiles -> >=2 "parallel" grid steps at 256/512 channels so both
    # v7x TensorCores get work; otherwise the (small) full Cout in one tile.
    return 128 if cout % 128 == 0 else cout


def _active_taps(H, W, dil):
    """3x3 taps that overlap the feature map; taps reading only zero padding are
    dropped statically, and the halo pad is sized from the survivors."""
    hs = [1] if dil >= H else [0, 1, 2]
    ws = [1] if dil >= W else [0, 1, 2]
    taps = [(kh, kw) for kh in hs for kw in ws]
    ph = dil if dil < H else 0
    pw = dil if dil < W else 0
    return taps, ph, pw


def _fill_halo(xpad_ref, x, ph, pw):
    """Copy x into the interior of the halo scratch and zero ONLY the border strips."""
    N, H, W, C = x.shape
    Wp = W + 2 * pw
    if ph > 0:
        xpad_ref[:, :ph, :, :] = jnp.zeros((N, ph, Wp, C), xpad_ref.dtype)
        xpad_ref[:, ph + H:, :, :] = jnp.zeros((N, ph, Wp, C), xpad_ref.dtype)
    if pw > 0:
        xpad_ref[:, ph:ph + H, :pw, :] = jnp.zeros((N, H, pw, C), xpad_ref.dtype)
        xpad_ref[:, ph:ph + H, pw + W:, :] = jnp.zeros((N, H, pw, C), xpad_ref.dtype)
    xpad_ref[:, ph:ph + H, pw:pw + W, :] = x


def _im2col(xpad_ref, taps, dil, ph, pw, N, H, W, C):
    """Gather the active taps into one (N*H*W, T*C) wide-K slab (VMEM only)."""
    M = N * H * W
    cols = [xpad_ref[:, ph + (kh - 1) * dil: ph + (kh - 1) * dil + H,
                     pw + (kw - 1) * dil: pw + (kw - 1) * dil + W, :].reshape(M, C)
            for (kh, kw) in taps]
    return cols[0] if len(cols) == 1 else jnp.concatenate(cols, axis=1)


# --------------------------------------------------------------------------- #
# Kernel 1: fused multi-branch 1x1 conv (+bias, +ReLU).                         #
#   conv1x1(concat(x_0..x_{B-1})) -> in-VMEM concat + ONE wide-K GEMM;          #
#   the concatenated tensor never touches HBM.                                  #
# --------------------------------------------------------------------------- #
def _conv1x1_kernel(*refs, n_branches, relu):
    xs = refs[:n_branches]
    w_ref, b_ref, o_ref = refs[n_branches:n_branches + 3]
    N, H, W, TN = o_ref.shape
    M = N * H * W
    parts = [x[...].reshape(M, x.shape[3]) for x in xs]
    xk = parts[0] if len(parts) == 1 else jnp.concatenate(parts, axis=1)
    y = jnp.dot(xk, w_ref[...], preferred_element_type=jnp.float32) + b_ref[...]
    if relu:
        y = jnp.maximum(y, 0.0)
    o_ref[...] = y.reshape(N, H, W, TN).astype(o_ref.dtype)


def conv1x1_fused(xs, w, bias, *, relu=True):
    N, H, W, _ = xs[0].shape
    K, Cout = w.shape
    assert sum(x.shape[3] for x in xs) == K
    TN = _cout_tile(Cout)
    kern = functools.partial(_conv1x1_kernel, n_branches=len(xs), relu=relu)
    in_specs = ([pl.BlockSpec((N, H, W, x.shape[3]), lambda j: (0, 0, 0, 0)) for x in xs]
                + [pl.BlockSpec((K, TN), lambda j: (0, j)),
                   pl.BlockSpec((1, TN), lambda j: (0, j))])
    return pl.pallas_call(
        kern,
        out_shape=jax.ShapeDtypeStruct((N, H, W, Cout), _ACT_DTYPE),
        grid=(Cout // TN,),                 # activation block index is constant
        in_specs=in_specs,                  # across Cout tiles -> DMA'd once
        out_specs=pl.BlockSpec((N, H, W, TN), lambda j: (0, 0, 0, j)),
        compiler_params=_compiler_params(1),
    )(*[x.astype(_ACT_DTYPE) for x in xs],
      w.astype(_ACT_DTYPE), bias.reshape(1, Cout).astype(jnp.float32))


# --------------------------------------------------------------------------- #
# Kernel 2: 3x3 (dilated) conv (+bias, +ReLU); halo padding built in VMEM.      #
#   Cin <= 128 : in-VMEM im2col over the active taps -> ONE wide-K GEMM.        #
#   Cin  > 128 : per-active-tap dots (K already >= 256), acc starts at 1st dot. #
# --------------------------------------------------------------------------- #
def _conv3x3_im2col_kernel(x_ref, w_ref, b_ref, o_ref, xpad_ref, *,
                           taps, dil, ph, pw, relu):
    N, H, W, TN = o_ref.shape
    C = x_ref.shape[3]
    _fill_halo(xpad_ref, x_ref[...], ph, pw)
    cols = _im2col(xpad_ref, taps, dil, ph, pw, N, H, W, C)
    y = jnp.dot(cols, w_ref[...], preferred_element_type=jnp.float32) + b_ref[...]
    if relu:
        y = jnp.maximum(y, 0.0)
    o_ref[...] = y.reshape(N, H, W, TN).astype(o_ref.dtype)


def _conv3x3_taps_kernel(x_ref, w_ref, b_ref, o_ref, xpad_ref, *,
                         taps, dil, ph, pw, relu):
    N, H, W, TN = o_ref.shape
    C = x_ref.shape[3]
    M = N * H * W
    _fill_halo(xpad_ref, x_ref[...], ph, pw)
    acc = None                           # acc from first dot; no elementwise ops
    for t, (kh, kw) in enumerate(taps):  # interleaved with the dot chain (v7x MRB)
        patch = xpad_ref[:, ph + (kh - 1) * dil: ph + (kh - 1) * dil + H,
                         pw + (kw - 1) * dil: pw + (kw - 1) * dil + W, :].reshape(M, C)
        d = jnp.dot(patch, w_ref[t], preferred_element_type=jnp.float32)
        acc = d if acc is None else acc + d
    y = acc + b_ref[...]
    if relu:
        y = jnp.maximum(y, 0.0)
    o_ref[...] = y.reshape(N, H, W, TN).astype(o_ref.dtype)


def conv3x3_bn_relu(x, w, bias, *, dilation=1, relu=True):
    N, H, W, Cin = x.shape
    Cout = w.shape[2]
    taps, ph, pw = _active_taps(H, W, dilation)
    if taps == [(1, 1)]:
        # Every off-centre tap reads only zero padding -> the conv degenerates to a
        # 1x1 GEMM with the centre-tap weight (common at the 1x1/2x2 deep layers).
        return conv1x1_fused([x], w[4], bias, relu=relu)
    TN = _cout_tile(Cout)
    w_taps = jnp.stack([w[kh * 3 + kw] for (kh, kw) in taps])      # (T, Cin, Cout)
    if Cin <= 128:
        w_in = w_taps.reshape(len(taps) * Cin, Cout).astype(_ACT_DTYPE)
        w_spec = pl.BlockSpec((len(taps) * Cin, TN), lambda j: (0, j))
        kern = functools.partial(_conv3x3_im2col_kernel, taps=taps, dil=dilation,
                                 ph=ph, pw=pw, relu=relu)
    else:
        w_in = w_taps.astype(_ACT_DTYPE)
        w_spec = pl.BlockSpec((len(taps), Cin, TN), lambda j: (0, 0, j))
        kern = functools.partial(_conv3x3_taps_kernel, taps=taps, dil=dilation,
                                 ph=ph, pw=pw, relu=relu)
    # TODO(synk): add spatial-row tiling with halo DMA before running at real
    # resolutions; the whole-spatial block only fits VMEM at small feature maps.
    return pl.pallas_call(
        kern,
        out_shape=jax.ShapeDtypeStruct((N, H, W, Cout), _ACT_DTYPE),
        grid=(Cout // TN,),
        in_specs=[pl.BlockSpec((N, H, W, Cin), lambda j: (0, 0, 0, 0)),
                  w_spec,
                  pl.BlockSpec((1, TN), lambda j: (0, j))],
        out_specs=pl.BlockSpec((N, H, W, TN), lambda j: (0, 0, 0, j)),
        scratch_shapes=[pltpu.VMEM((N, H + 2 * ph, W + 2 * pw, Cin), _ACT_DTYPE)],
        compiler_params=_compiler_params(1),
    )(x.astype(_ACT_DTYPE), w_in, bias.reshape(1, Cout).astype(jnp.float32))


# --------------------------------------------------------------------------- #
# Kernel 3: fused _DenseAsppBlock = (multi-branch 1x1 + BN + ReLU) followed by  #
#           (dilated 3x3 + BN + ReLU), all in a single pallas_call.             #
# --------------------------------------------------------------------------- #
def _aspp_block_kernel(*refs, n_branches, taps, dil, ph, pw):
    xs = refs[:n_branches]
    wt_ref, bt_ref, wd_ref, bd_ref, o_ref = refs[n_branches:n_branches + 5]
    xpad_ref = refs[n_branches + 5]
    N, H, W, C2 = o_ref.shape
    C1 = wt_ref.shape[1]
    M = N * H * W
    parts = [x[...].reshape(M, x.shape[3]) for x in xs]
    xk = parts[0] if len(parts) == 1 else jnp.concatenate(parts, axis=1)
    f1 = jnp.dot(xk, wt_ref[...], preferred_element_type=jnp.float32) + bt_ref[...]
    f1 = jnp.maximum(f1, 0.0).astype(xpad_ref.dtype)
    if taps == [(1, 1)]:
        cols = f1                                         # no halo needed
    else:
        _fill_halo(xpad_ref, f1.reshape(N, H, W, C1), ph, pw)
        cols = _im2col(xpad_ref, taps, dil, ph, pw, N, H, W, C1)
    y = jnp.dot(cols, wd_ref[...], preferred_element_type=jnp.float32) + bd_ref[...]
    y = jnp.maximum(y, 0.0)
    o_ref[...] = y.reshape(N, H, W, C2).astype(o_ref.dtype)


def aspp_block_fused(xs, wt, bt, wd, bd, *, dilation):
    N, H, W, _ = xs[0].shape
    K1, C1 = wt.shape
    C2 = wd.shape[2]
    assert sum(x.shape[3] for x in xs) == K1
    taps, ph, pw = _active_taps(H, W, dilation)
    wd_taps = jnp.stack([wd[kh * 3 + kw] for (kh, kw) in taps]
                        ).reshape(len(taps) * C1, C2)
    kern = functools.partial(_aspp_block_kernel, n_branches=len(xs),
                             taps=taps, dil=dilation, ph=ph, pw=pw)
    in_specs = ([pl.BlockSpec((N, H, W, x.shape[3]), lambda j: (0, 0, 0, 0)) for x in xs]
                + [pl.BlockSpec((K1, C1), lambda j: (0, 0)),
                   pl.BlockSpec((1, C1), lambda j: (0, 0)),
                   pl.BlockSpec((len(taps) * C1, C2), lambda j: (0, 0)),
                   pl.BlockSpec((1, C2), lambda j: (0, 0))])
    return pl.pallas_call(
        kern,
        out_shape=jax.ShapeDtypeStruct((N, H, W, C2), _ACT_DTYPE),
        grid=(1,),
        in_specs=in_specs,
        out_specs=pl.BlockSpec((N, H, W, C2), lambda j: (0, 0, 0, 0)),
        scratch_shapes=[pltpu.VMEM((N, H + 2 * ph, W + 2 * pw, C1), _ACT_DTYPE)],
        compiler_params=_compiler_params(1),
    )(*[x.astype(_ACT_DTYPE) for x in xs],
      wt.astype(_ACT_DTYPE), bt.reshape(1, C1).astype(jnp.float32),
      wd_taps.astype(_ACT_DTYPE), bd.reshape(1, C2).astype(jnp.float32))


# --------------------------------------------------------------------------- #
# Deterministic parameter construction (kaiming fan_out; BN gamma=1/beta=0,     #
# running stats (0,1), eps=1e-5, inference). BN scale is folded into weights.   #
# --------------------------------------------------------------------------- #
_ROOT_KEY = jax.random.PRNGKey(0)
_KEY_CTR = [0]


def _next_key():
    _KEY_CTR[0] += 1
    return jax.random.fold_in(_ROOT_KEY, _KEY_CTR[0])


def _bn_fold(cout):
    eps = 1e-5
    gamma = jnp.ones((cout,), jnp.float32)
    beta = jnp.zeros((cout,), jnp.float32)
    mean = jnp.zeros((cout,), jnp.float32)
    var = jnp.ones((cout,), jnp.float32)
    conv_b = jnp.zeros((cout,), jnp.float32)
    scale = gamma / jnp.sqrt(var + eps)
    bias = beta + scale * (conv_b - mean)
    return scale, bias


def make_conv3(cin, cout):
    std = (2.0 / (cout * 9)) ** 0.5          # kaiming_normal_, mode='fan_out', relu
    w = jax.random.normal(_next_key(), (9, cin, cout), jnp.float32) * std
    scale, bias = _bn_fold(cout)
    return {"w": w * scale[None, None, :], "bias": bias}


def make_conv1(cin, cout):
    std = (2.0 / cout) ** 0.5
    w = jax.random.normal(_next_key(), (cin, cout), jnp.float32) * std
    scale, bias = _bn_fold(cout)
    return {"w": w * scale[None, :], "bias": bias}


def apply_conv1(p, xs, *, relu=True):
    return conv1x1_fused(xs, p["w"], p["bias"], relu=relu)


def apply_conv3(p, x, *, dilation=1, relu=True):
    w, bias = p["w"], p["bias"]
    cin = w.shape[1]
    if cin <= 8:
        # Stem conv (Cin=3): build the K=9*Cin im2col in bf16 (tiny) at the XLA
        # level and run one wide-K fused GEMM.
        # TODO(synk): move the stem im2col into the kernel as well.
        N, H, W, C = x.shape
        d = dilation
        xp = jnp.pad(x.astype(_ACT_DTYPE), ((0, 0), (d, d), (d, d), (0, 0)))
        cols = jnp.concatenate(
            [xp[:, kh * d:kh * d + H, kw * d:kw * d + W, :]
             for kh in range(3) for kw in range(3)], axis=-1)
        return conv1x1_fused([cols], w.reshape(9 * C, w.shape[2]), bias, relu=relu)
    return conv3x3_bn_relu(x, w, bias, dilation=dilation, relu=relu)


# --------------------------------------------------------------------------- #
# denseASPP / _DenseAsppBlock (dense concat fused into the consuming GEMMs,     #
# each dense block = ONE pallas_call)                                           #
# --------------------------------------------------------------------------- #
def init_dense_aspp(channel, dilates, reduce_channel_times=2):
    num_channels = max(channel // reduce_channel_times, 32)
    d_feature1, d_feature2 = 64, 64
    blocks = []
    for i, d in enumerate(dilates):
        blocks.append({"tmp": make_conv1(num_channels + i * d_feature2, d_feature1),
                       "dil": make_conv3(d_feature1, d_feature2),
                       "rate": d})
    return {"init": make_conv1(channel, num_channels),
            "blocks": blocks,
            "last": make_conv1(num_channels + len(dilates) * d_feature2, channel)}


def dense_aspp_forward(p, x):
    # Dense connections stay a list of branches; every consuming GEMM fuses the
    # concat in VMEM, so the growing concatenation never materialises in HBM.
    feats = [apply_conv1(p["init"], [x])]
    for blk in p["blocks"]:
        f = aspp_block_fused(feats, blk["tmp"]["w"], blk["tmp"]["bias"],
                             blk["dil"]["w"], blk["dil"]["bias"],
                             dilation=blk["rate"])
        # drop_out == 0 in ConvNet_smlc, so no dropout2d branch
        feats.append(f)
    return apply_conv1(p["last"], feats)


# --------------------------------------------------------------------------- #
# MultiFieAtConv2d_SMLC                                                         #
# --------------------------------------------------------------------------- #
# TODO(synk): ShortFieldConv2d / MidLongFieldConv2d / GlobalFieldConv2d were not
# provided with the module source; stood in by channel-preserving conv3x3+BN+ReLU
# blocks so the 5-way concat + merge_conv structure is preserved.
def init_multifie(channels, dilates):
    return {"s": make_conv3(channels, channels),
            "m": make_conv3(channels, channels),
            "l": init_dense_aspp(channels, dilates),
            "c": make_conv3(channels, channels),
            "merge": make_conv1(channels * 5, channels)}


def multifie_forward(p, x):
    s = apply_conv3(p["s"], x)
    m = apply_conv3(p["m"], x)
    l = dense_aspp_forward(p["l"], x)
    c = apply_conv3(p["c"], x)
    return apply_conv1(p["merge"], [x, s, m, l, c])   # 5-way concat fused into GEMM


# --------------------------------------------------------------------------- #
# ConvNet_smlc encoder                                                          #
# --------------------------------------------------------------------------- #
def init_encoder(channels=3):
    channel_list = [64, 128, 256, 512, 512]
    dilate_list = [(3, 6, 12), (3, 6, 12), (3, 6, 12), (1, 3, 6), (1, 2, 3)]
    return {
        "l1": [make_conv3(channels, 64), init_multifie(channel_list[0], dilate_list[0])],
        "l2": [make_conv3(64, 128), init_multifie(channel_list[1], dilate_list[1])],
        "l3": [make_conv3(128, 256), init_multifie(channel_list[2], dilate_list[2]),
               make_conv3(256, 256)],
        "l4": [make_conv3(256, 512), init_multifie(channel_list[3], dilate_list[3]),
               make_conv3(512, 512)],
        "l5": [make_conv3(512, 512), init_multifie(channel_list[4], dilate_list[4]),
               make_conv3(512, 512)],
    }


def maxpool2x2(x):
    N, H, W, C = x.shape
    return x.reshape(N, H // 2, 2, W // 2, 2, C).max(axis=(2, 4))


def encoder_forward(p, x):
    e1 = multifie_forward(p["l1"][1], apply_conv3(p["l1"][0], x))

    h = maxpool2x2(e1)
    e2 = multifie_forward(p["l2"][1], apply_conv3(p["l2"][0], h))

    h = maxpool2x2(e2)
    e3 = multifie_forward(p["l3"][1], apply_conv3(p["l3"][0], h))
    e3 = apply_conv3(p["l3"][2], e3)

    h = maxpool2x2(e3)
    e4 = multifie_forward(p["l4"][1], apply_conv3(p["l4"][0], h))
    e4 = apply_conv3(p["l4"][2], e4)

    h = maxpool2x2(e4)
    e5 = multifie_forward(p["l5"][1], apply_conv3(p["l5"][0], h))
    e5 = apply_conv3(p["l5"][2], e5)

    return e1, e2, e3, e4, e5


# --------------------------------------------------------------------------- #
# Decoder                                                                       #
# --------------------------------------------------------------------------- #
def _upsample_to(x, H, W):
    N, _, _, C = x.shape
    return jax.image.resize(x, (N, H, W, C), method="bilinear")


def init_decoder(class_num=1):
    def score_w(cin):
        std = (2.0 / class_num) ** 0.5        # kaiming fan_out for a 1x1 conv
        return jax.random.normal(_next_key(), (cin, class_num), jnp.float32) * std
    return {"w3": score_w(256), "w4": score_w(512), "w5": score_w(512)}


def decoder_forward(p, x, e3, e4, e5):
    # TODO(synk): DecFCN source was not provided; FCN-8s style stand-in (1x1 score
    # convs + bilinear upsampling). Cout=1 score convs are left to XLA -- a 1-lane
    # Pallas out_spec would run fully masked stores at 1/128 lane utilisation.
    def score(w, e):
        return jnp.einsum("nhwc,ck->nhwk", e.astype(jnp.float32), w)
    s5, s4, s3 = score(p["w5"], e5), score(p["w4"], e4), score(p["w3"], e3)
    u = _upsample_to(s5, e4.shape[1], e4.shape[2]) + s4
    u = _upsample_to(u, e3.shape[1], e3.shape[2]) + s3
    return _upsample_to(u, x.shape[1], x.shape[2])


# --------------------------------------------------------------------------- #
# FCN_SMLC                                                                      #
# --------------------------------------------------------------------------- #
def init_fcn_smlc():
    return {"encoder": init_encoder(channels=3), "decoder": init_decoder(class_num=1)}


def fcn_smlc_forward(params, x):
    e1, e2, e3, e4, e5 = encoder_forward(params["encoder"], x)
    o1 = decoder_forward(params["decoder"], x, e3, e4, e5)
    return o1


if __name__ == "__main__":
    params = init_fcn_smlc()
    # PyTorch-convention input: NCHW (2, 3, 16, 16); transposed to the NHWC layout.
    x_nchw = jax.random.normal(jax.random.PRNGKey(0), (2, 3, 16, 16), jnp.float32)
    x = jnp.transpose(x_nchw, (0, 2, 3, 1))
    o1 = fcn_smlc_forward(params, x)
    jax.block_until_ready(o1)
    assert o1.shape == (2, 16, 16, 1)
    print("KERNEL_OK")
</pallas_src>

<mosaic_0001>
module attributes {stable_mosaic.version = 11 : i64} {
  func.func @_conv1x1_kernel(%arg0: i32, %arg1: memref<2x16x16x27xbf16, #tpu.memory_space<vmem>>, %arg2: memref<27x64xbf16, #tpu.memory_space<vmem>>, %arg3: memref<1x64xf32, #tpu.memory_space<vmem>>, %arg4: memref<2x16x16x64xbf16, #tpu.memory_space<vmem>>) attributes {dimension_semantics = [#tpu.dimension_semantics<parallel>], iteration_bounds = array<i64: 1>, scalar_prefetch = 0 : i64, scratch_operands = 0 : i64, tpu.core_type = #tpu.core_type<tc>, window_params = [{pipeline_mode = #tpu.pipeline_mode<synchronous>, transform_indices = @transform_0, window_bounds = array<i64: 2, 16, 16, 27>}, {transform_indices = @transform_1, window_bounds = array<i64: 27, 64>}, {transform_indices = @transform_2, window_bounds = array<i64: 1, 64>}, {transform_indices = @transform_3, window_bounds = array<i64: 2, 16, 16, 64>}]} {
    %c0 = arith.constant 0 : index
    %c0_0 = arith.constant 0 : index
    %c0_1 = arith.constant 0 : index
    %c0_2 = arith.constant 0 : index
    %0 = vector.load %arg1[%c0, %c0_0, %c0_1, %c0_2] : memref<2x16x16x27xbf16, #tpu.memory_space<vmem>>, vector<2x16x16x27xbf16>
    %1 = vector.shape_cast %0 : vector<2x16x16x27xbf16> to vector<512x27xbf16>
    %c0_3 = arith.constant 0 : index
    %c0_4 = arith.constant 0 : index
    %2 = vector.load %arg2[%c0_3, %c0_4] : memref<27x64xbf16, #tpu.memory_space<vmem>>, vector<27x64xbf16>
    %cst = arith.constant dense<0.000000e+00> : vector<512x64xf32>
    %3 = tpu.matmul %1, %2, %cst {dimension_numbers = #tpu.dot_dimension_numbers<[1], [0], [0], [1], [0, 0, 1, 1], [], []>} : vector<512x27xbf16>, vector<27x64xbf16>, vector<512x64xf32> -> vector<512x64xf32>
    %c0_5 = arith.constant 0 : index
    %c0_6 = arith.constant 0 : index
    %4 = vector.load %arg3[%c0_5, %c0_6] : memref<1x64xf32, #tpu.memory_space<vmem>>, vector<1x64xf32>
    %5 = vector.broadcast %4 : vector<1x64xf32> to vector<512x64xf32>
    %6 = arith.addf %3, %5 : vector<512x64xf32>
    %cst_7 = arith.constant 0.000000e+00 : f32
    %7 = vector.broadcast %cst_7 : f32 to vector<512x64xf32>
    %8 = arith.maximumf %6, %7 : vector<512x64xf32>
    %9 = vector.shape_cast %8 : vector<512x64xf32> to vector<2x16x16x64xf32>
    %10 = arith.truncf %9 : vector<2x16x16x64xf32> to vector<2x16x16x64xbf16>
    %c0_8 = arith.constant 0 : index
    %c0_9 = arith.constant 0 : index
    %c0_10 = arith.constant 0 : index
    %c0_11 = arith.constant 0 : index
    %11 = vector.load %arg4[%c0_8, %c0_9, %c0_10, %c0_11] : memref<2x16x16x64xbf16, #tpu.memory_space<vmem>>, vector<2x16x16x64xbf16>
    tpu.vector_store %arg4[%c0_8, %c0_9, %c0_10, %c0_11], %10 {strides = array<i32>} : memref<2x16x16x64xbf16, #tpu.memory_space<vmem>>, vector<2x16x16x64xbf16>,
    return
  }
  func.func @transform_0(%arg0: i32) -> (i32, i32, i32, i32) {
    %c0_i32 = arith.constant 0 : i32
    %c0_i32_0 = arith.constant 0 : i32
    %c0_i32_1 = arith.constant 0 : i32
    %c0_i32_2 = arith.constant 0 : i32
    %c0_i32_3 = arith.constant 0 : i32
    return %c0_i32, %c0_i32_0, %c0_i32_1, %c0_i32_2 : i32, i32, i32, i32
  }
  func.func @transform_1(%arg0: i32) -> (i32, i32) {
    %c0_i32 = arith.constant 0 : i32
    %c0_i32_0 = arith.constant 0 : i32
    return %c0_i32, %arg0 : i32, i32
  }
  func.func @transform_2(%arg0: i32) -> (i32, i32) {
    %c0_i32 = arith.constant 0 : i32
    %c0_i32_0 = arith.constant 0 : i32
    return %c0_i32, %arg0 : i32, i32
  }
  func.func @transform_3(%arg0: i32) -> (i32, i32, i32, i32) {
    %c0_i32 = arith.constant 0 : i32
    %c0_i32_0 = arith.constant 0 : i32
    %c0_i32_1 = arith.constant 0 : i32
    %c0_i32_2 = arith.constant 0 : i32
    return %c0_i32, %c0_i32_0, %c0_i32_1, %arg0 : i32, i32, i32, i32
  }
}

</mosaic_0001>

<llo_original>
// kernel: tpu_custom_call.1
$region0: #{tpu_custom_call.1}
  #allocation0 [shape = 'u32[]', space=smem, size = 0x4, offset = 0x4, fixed_abs, tag = 'smem constant byte address 0x4 - core index']
  #allocation1 [shape = 'u32[144,128]{1,0:T(1,128)}', space=vmem, size = 0x12000, scoped, tag = 'internal scratch']
  %s0 = inlined_call_operand.hbm [shape: bf16[2,16,16,27], index: 0, kind: input, shape index: {}]
  %s1 = inlined_call_operand.hbm [shape: bf16[27,64], index: 1, kind: input, shape index: {}]
  %s2 = inlined_call_operand.vmem [shape: f32[1,64], index: 2, kind: input, shape index: {}]
  %s3 = inlined_call_operand.hbm [shape: bf16[2,16,16,64], index: 3, kind: output, shape index: {}]
  %s4 = sld [smem:[#allocation0]]
  $region30: #{tpu_custom_call.1} parent=0
    _
  %s6 = ssub.s32 1, %s4
  %s7 = scalar_select 0, %s6, %s4
  $region1: #{tpu_custom_call.1} parent=0
    #allocation2 [shape = 'u8[131072]{0}', space=vmem, size = 0x20000, scoped, tag = 'input window, operand 0, single buffered']
    #allocation3 [shape = 's32[1]{0}', space=sflag, size = 0x4, scoped, tag = 'scoped memory for tpu_custom_call.1']
    #allocation4 [shape = 's32[1]{0}', space=sflag, size = 0x4, scoped, tag = 'scoped memory for tpu_custom_call.1']
    #allocation5 [shape = 'u8[8192]{0}', space=vmem, size = 0x2000, scoped, tag = 'input window, operand 1, single buffered']
    #allocation6 [shape = 's32[1]{0}', space=sflag, size = 0x4, scoped, tag = 'scoped memory for tpu_custom_call.1']
    #allocation7 [shape = 'u8[131072]{0}', space=vmem, size = 0x20000, scoped, tag = 'output window, operand 0, single buffered']
    %8 = vsyncpa [#allocation3], 0
    %9 = vsyncpa [#allocation6], 0
    %10 = vsyncpa [#allocation4], 0
    // Predicated region
    $region2: #{tpu_custom_call.1} parent=1 // pred_check
      _
    $region3: #{tpu_custom_call.1} parent=1 // pred_check_branch
      %12 = sbr.rel (0) target = $region5
    $region4: #{tpu_custom_call.1} parent=1 // pred_region
      %s14 = ssub.s32 4096, 4096
      %15 = vsyncadd [#allocation3], %s14
      %s16 = sshll.u32 [#allocation2], 4
      %s17 = int_to_ptr.vmem [resolvable:$true] %s16
      %22 = dma.hbm_to_vmem [thread:$0]  %s0, 4096, %s17, [#allocation3], 64, 64, 4
    $region5: #{tpu_custom_call.1} parent=1 // pred_fallthru
      _
    // Predicated region
    $region6: #{tpu_custom_call.1} parent=1 // pred_check
      _
    $region7: #{tpu_custom_call.1} parent=1 // pred_check_branch
      %24 = sbr.rel (0) target = $region9
    $region8: #{tpu_custom_call.1} parent=1 // pred_region
      %s26 = ssub.s32 256, 256
      %27 = vsyncadd [#allocation6], %s26
      %s28 = sshll.u32 [#allocation5], 4
      %s29 = int_to_ptr.vmem [resolvable:$true] %s28
      %34 = dma.hbm_to_vmem [thread:$0]  %s1, 256, %s29, [#allocation6], 64, 64, 4
    $region9: #{tpu_custom_call.1} parent=1 // pred_fallthru
      _
    // Predicated region
    $region10: #{tpu_custom_call.1} parent=1 // pred_check
      _
    $region11: #{tpu_custom_call.1} parent=1 // pred_check_branch
      %36 = sbr.rel (0) target = $region13
    $region12: #{tpu_custom_call.1} parent=1 // pred_region
      _
    $region13: #{tpu_custom_call.1} parent=1 // pred_fallthru
      _
    // Predicated region
    $region14: #{tpu_custom_call.1} parent=1 // pred_check
      _
    $region15: #{tpu_custom_call.1} parent=1 // pred_check_branch
      %38 = sbr.rel (0) target = $region17
    $region16: #{tpu_custom_call.1} parent=1 // pred_region
      %39 = dma.done [#allocation3], 4096
    $region17: #{tpu_custom_call.1} parent=1 // pred_fallthru
      _
    // Predicated region
    $region18: #{tpu_custom_call.1} parent=1 // pred_check
      _
    $region19: #{tpu_custom_call.1} parent=1 // pred_check_branch
      %41 = sbr.rel (0) target = $region21
    $region20: #{tpu_custom_call.1} parent=1 // pred_region
      %42 = dma.done [#allocation6], 256
    $region21: #{tpu_custom_call.1} parent=1 // pred_fallthru
      _
    %v44 = vld [vmem:[#allocation2] sm:$0xf]
    %v45 = vld [vmem:[#allocation2 + $0x4] sm:$0xf]
    %v46 = vld [vmem:[#allocation2 + $0x8] sm:$0xf]
    %v47 = vld [vmem:[#allocation2 + $0xc] sm:$0xf]
    %v48 = vld [vmem:[#allocation2 + $0x10] sm:$0xf]
    %v49 = vld [vmem:[#allocation2 + $0x14] sm:$0xf]
    %v50 = vld [vmem:[#allocation2 + $0x18] sm:$0xf]
    %v51 = vld [vmem:[#allocation2 + $0x1c] sm:$0xf]
    %v52 = vld [vmem:[#allocation2 + $0x20] sm:$0xf]
    %v53 = vld [vmem:[#allocation2 + $0x24] sm:$0xf]
    %v54 = vld [vmem:[#allocation2 + $0x28] sm:$0xf]
    %v55 = vld [vmem:[#allocation2 + $0x2c] sm:$0xf]
    %v56 = vld [vmem:[#allocation2 + $0x30] sm:$0xf]
    %v57 = vld [vmem:[#allocation2 + $0x34] sm:$0xf]
    %v58 = vld [vmem:[#allocation2 + $0x38] sm:$0xf]
    %v59 = vld [vmem:[#allocation2 + $0x3c] sm:$0xf]
    %v60 = vld [vmem:[#allocation2 + $0x40] sm:$0xf]
    %v61 = vld [vmem:[#allocation2 + $0x44] sm:$0xf]
    %v62 = vld [vmem:[#allocation2 + $0x48] sm:$0xf]
    %v63 = vld [vmem:[#allocation2 + $0x4c] sm:$0xf]
    %v64 = vld [vmem:[#allocation2 + $0x50] sm:$0xf]
    %v65 = vld [vmem:[#allocation2 + $0x54] sm:$0xf]
    %v66 = vld [vmem:[#allocation2 + $0x58] sm:$0xf]
    %v67 = vld [vmem:[#allocation2 + $0x5c] sm:$0xf]
    %v68 = vld [vmem:[#allocation2 + $0x60] sm:$0xf]
    %v69 = vld [vmem:[#allocation2 + $0x64] sm:$0xf]
    %v70 = vld [vmem:[#allocation2 + $0x68] sm:$0xf]
    %v71 = vld [vmem:[#allocation2 + $0x6c] sm:$0xf]
    %v72 = vld [vmem:[#allocation2 + $0x70] sm:$0xf]
    %v73 = vld [vmem:[#allocation2 + $0x74] sm:$0xf]
    %v74 = vld [vmem:[#allocation2 + $0x78] sm:$0xf]
    %v75 = vld [vmem:[#allocation2 + $0x7c] sm:$0xf]
    %v76 = vld [vmem:[#allocation2 + $0x80] sm:$0xf]
    %v77 = vld [vmem:[#allocation2 + $0x84] sm:$0xf]
    %v78 = vld [vmem:[#allocation2 + $0x88] sm:$0xf]
    %v79 = vld [vmem:[#allocation2 + $0x8c] sm:$0xf]
    %v80 = vld [vmem:[#allocation2 + $0x90] sm:$0xf]
    %v81 = vld [vmem:[#allocation2 + $0x94] sm:$0xf]
    %v82 = vld [vmem:[#allocation2 + $0x98] sm:$0xf]
    %v83 = vld [vmem:[#allocation2 + $0x9c] sm:$0xf]
    %v84 = vld [vmem:[#allocation2 + $0xa0] sm:$0xf]
    %v85 = vld [vmem:[#allocation2 + $0xa4] sm:$0xf]
    %v86 = vld [vmem:[#allocation2 + $0xa8] sm:$0xf]
    %v87 = vld [vmem:[#allocation2 + $0xac] sm:$0xf]
    %v88 = vld [vmem:[#allocation2 + $0xb0] sm:$0xf]
    %v89 = vld [vmem:[#allocation2 + $0xb4] sm:$0xf]
    %v90 = vld [vmem:[#allocation2 + $0xb8] sm:$0xf]
    %v91 = vld [vmem:[#allocation2 + $0xbc] sm:$0xf]
    %v92 = vld [vmem:[#allocation2 + $0xc0] sm:$0xf]
    %v93 = vld [vmem:[#allocation2 + $0xc4] sm:$0xf]
    %v94 = vld [vmem:[#allocation2 + $0xc8] sm:$0xf]
    %v95 = vld [vmem:[#allocation2 + $0xcc] sm:$0xf]
    %v96 = vld [vmem:[#allocation2 + $0xd0] sm:$0xf]
    %v97 = vld [vmem:[#allocation2 + $0xd4] sm:$0xf]
    %v98 = vld [vmem:[#allocation2 + $0xd8] sm:$0xf]
    %v99 = vld [vmem:[#allocation2 + $0xdc] sm:$0xf]
    %v100 = vld [vmem:[#allocation2 + $0xe0] sm:$0xf]
    %v101 = vld [vmem:[#allocation2 + $0xe4] sm:$0xf]
    %v102 = vld [vmem:[#allocation2 + $0xe8] sm:$0xf]
    %v103 = vld [vmem:[#allocation2 + $0xec] sm:$0xf]
    %v104 = vld [vmem:[#allocation2 + $0xf0] sm:$0xf]
    %v105 = vld [vmem:[#allocation2 + $0xf4] sm:$0xf]
    %v106 = vld [vmem:[#allocation2 + $0xf8] sm:$0xf]
    %v107 = vld [vmem:[#allocation2 + $0xfc] sm:$0xf]
    %v108 = vld [vmem:[#allocation5] sm:$0xf]
    %v109 = vld [vmem:[#allocation5 + $0x4] sm:$0xf]
    %v110 = vld [vmem:[#allocation5 + $0x8] sm:$0xf]
    %v111 = vld [vmem:[#allocation5 + $0xc] sm:$0x3]
    %v112 = vld [vmem:[%s2] sm:$0x1]
    %v114 = vlaneseq
    %v115 = vshrl.u32 %v114, 7
    %v116 = vsub.s32 0, %v115
    %v117 = vrot.slane %v112, %v116
    %v183 = vunpack.c.l.b16 %v44
    %v184 = vunpack.c.l.b16 %v45
    %v185 = vunpack.c.l.b16 %v46
    %v186 = vunpack.c.l.b16 %v47
    %v187 = vunpack.c.l.b16 %v48
    %v188 = vunpack.c.l.b16 %v49
    %v189 = vunpack.c.l.b16 %v50
    %v190 = vunpack.c.l.b16 %v51
    %v191 = vunpack.c.l.b16 %v52
    %v192 = vunpack.c.l.b16 %v53
    %v193 = vunpack.c.l.b16 %v54
    %v194 = vunpack.c.l.b16 %v55
    %v195 = vunpack.c.l.b16 %v56
    %v196 = vunpack.c.l.b16 %v57
    %v197 = vunpack.c.l.b16 %v58
    %v198 = vunpack.c.l.b16 %v59
    %v199 = vunpack.c.l.b16 %v60
    %v200 = vunpack.c.l.b16 %v61
    %v201 = vunpack.c.l.b16 %v62
    %v202 = vunpack.c.l.b16 %v63
    %v203 = vunpack.c.l.b16 %v64
    %v204 = vunpack.c.l.b16 %v65
    %v205 = vunpack.c.l.b16 %v66
    %v206 = vunpack.c.l.b16 %v67
    %v207 = vunpack.c.l.b16 %v68
    %v208 = vunpack.c.l.b16 %v69
    %v209 = vunpack.c.l.b16 %v70
    %v210 = vunpack.c.l.b16 %v71
    %v211 = vunpack.c.l.b16 %v72
    %v212 = vunpack.c.l.b16 %v73
    %v213 = vunpack.c.l.b16 %v74
    %v214 = vunpack.c.l.b16 %v75
    %v215 = vunpack.c.l.b16 %v76
    %v216 = vunpack.c.l.b16 %v77
    %v217 = vunpack.c.l.b16 %v78
    %v218 = vunpack.c.l.b16 %v79
    %v219 = vunpack.c.l.b16 %v80
    %v220 = vunpack.c.l.b16 %v81
    %v221 = vunpack.c.l.b16 %v82
    %v222 = vunpack.c.l.b16 %v83
    %v223 = vunpack.c.l.b16 %v84
    %v224 = vunpack.c.l.b16 %v85
    %v225 = vunpack.c.l.b16 %v86
    %v226 = vunpack.c.l.b16 %v87
    %v227 = vunpack.c.l.b16 %v88
    %v228 = vunpack.c.l.b16 %v89
    %v229 = vunpack.c.l.b16 %v90
    %v230 = vunpack.c.l.b16 %v91
    %v231 = vunpack.c.l.b16 %v92
    %v232 = vunpack.c.l.b16 %v93
    %v233 = vunpack.c.l.b16 %v94
    %v234 = vunpack.c.l.b16 %v95
    %v235 = vunpack.c.l.b16 %v96
    %v236 = vunpack.c.l.b16 %v97
    %v237 = vunpack.c.l.b16 %v98
    %v238 = vunpack.c.l.b16 %v99
    %v239 = vunpack.c.l.b16 %v100
    %v240 = vunpack.c.l.b16 %v101
    %v241 = vunpack.c.l.b16 %v102
    %v242 = vunpack.c.l.b16 %v103
    %v243 = vunpack.c.l.b16 %v104
    %v244 = vunpack.c.l.b16 %v105
    %v245 = vunpack.c.l.b16 %v106
    %v246 = vunpack.c.l.b16 %v107
    %v247 = vpack.c.b16 %v184, %v183
    %v248 = vpack.c.b16 %v186, %v185
    %v249 = vpack.c.b16 %v188, %v187
    %v250 = vpack.c.b16 %v190, %v189
    %v251 = vpack.c.b16 %v192, %v191
    %v252 = vpack.c.b16 %v194, %v193
    %v253 = vpack.c.b16 %v196, %v195
    %v254 = vpack.c.b16 %v198, %v197
    %v255 = vpack.c.b16 %v200, %v199
    %v256 = vpack.c.b16 %v202, %v201
    %v257 = vpack.c.b16 %v204, %v203
    %v258 = vpack.c.b16 %v206, %v205
    %v259 = vpack.c.b16 %v208, %v207
    %v260 = vpack.c.b16 %v210, %v209
    %v261 = vpack.c.b16 %v212, %v211
    %v262 = vpack.c.b16 %v214, %v213
    %v263 = vpack.c.b16 %v216, %v215
    %v264 = vpack.c.b16 %v218, %v217
    %v265 = vpack.c.b16 %v220, %v219
    %v266 = vpack.c.b16 %v222, %v221
    %v267 = vpack.c.b16 %v224, %v223
    %v268 = vpack.c.b16 %v226, %v225
    %v269 = vpack.c.b16 %v228, %v227
    %v270 = vpack.c.b16 %v230, %v229
    %v271 = vpack.c.b16 %v232, %v231
    %v272 = vpack.c.b16 %v234, %v233
    %v273 = vpack.c.b16 %v236, %v235
    %v274 = vpack.c.b16 %v238, %v237
    %v275 = vpack.c.b16 %v240, %v239
    %v276 = vpack.c.b16 %v242, %v241
    %v277 = vpack.c.b16 %v244, %v243
    %v278 = vpack.c.b16 %v246, %v245
    %v283 = vunpack.c.l.b16 %v108
    %v284 = vunpack.c.l.b16 %v109
    %v285 = vunpack.c.l.b16 %v110
    %v286 = vunpack.c.l.b16 %v111
    %v287 = vpack.c.b16 %v284, %v283
    %v288 = vpack.c.b16 %v286, %v285
    %vm290 = vcmask 220160
    %v292 = vsel %vm290, %v247, 0
    %v295 = vsel %vm290, %v248, 0
    %v298 = vsel %vm290, %v249, 0
    %v301 = vsel %vm290, %v250, 0
    %v304 = vsel %vm290, %v251, 0
    %v307 = vsel %vm290, %v252, 0
    %v310 = vsel %vm290, %v253, 0
    %v313 = vsel %vm290, %v254, 0
    %v316 = vsel %vm290, %v255, 0
    %v319 = vsel %vm290, %v256, 0
    %v322 = vsel %vm290, %v257, 0
    %v325 = vsel %vm290, %v258, 0
    %v328 = vsel %vm290, %v259, 0
    %v331 = vsel %vm290, %v260, 0
    %v334 = vsel %vm290, %v261, 0
    %v337 = vsel %vm290, %v262, 0
    %v340 = vsel %vm290, %v263, 0
    %v343 = vsel %vm290, %v264, 0
    %v346 = vsel %vm290, %v265, 0
    %v349 = vsel %vm290, %v266, 0
    %v352 = vsel %vm290, %v267, 0
    %v355 = vsel %vm290, %v268, 0
    %v358 = vsel %vm290, %v269, 0
    %v361 = vsel %vm290, %v270, 0
    %v364 = vsel %vm290, %v271, 0
    %v367 = vsel %vm290, %v272, 0
    %v370 = vsel %vm290, %v273, 0
    %v373 = vsel %vm290, %v274, 0
    %v376 = vsel %vm290, %v275, 0
    %v379 = vsel %vm290, %v276, 0
    %v382 = vsel %vm290, %v277, 0
    %v385 = vsel %vm290, %v278, 0
    %vm387 = vcmask 1044480
    %vm388 = vcmask 1045504
    %v389 = vsel %vm387, 4294967295, 65535
    %v390 = vsel %vm388, %v389, 0
    %v392 = vand.u32 %v288, %v390
    %394 = vmatprep.subr.bf16.mxu0 0
    %395 = vmatpush1.bf16.msra.mxu0 %v287
    %396 = vmatprep.subr.bf16.mxu0 0
    %397 = vmatpush1.bf16.msra.mxu0 %v392
    %398 = vmatprep.subr.bf16.mxu0 0
    %399 = vmatpush1.bf16.msra.mxu0 0
    %400 = vmatprep.subr.bf16.mxu0 0
    %401 = vmatpush1.bf16.msra.mxu0 0
    %402 = vmatprep.subr.bf16.mxu0 0
    %403 = vmatpush1.bf16.msra.mxu0 0
    %404 = vmatprep.subr.bf16.mxu0 0
    %405 = vmatpush1.bf16.msra.mxu0 0
    %406 = vmatprep.subr.bf16.mxu0 0
    %407 = vmatpush1.bf16.msra.mxu0 0
    %408 = vmatprep.subr.bf16.mxu0 0
    %409 = vmatpush1.bf16.msra.mxu0 0
    %410 = vmatprep.subr.bf16.mxu0 0
    %411 = vmatpush1.bf16.msra.mxu0 0
    %412 = vmatprep.subr.bf16.mxu0 0
    %413 = vmatpush1.bf16.msra.mxu0 0
    %414 = vmatprep.subr.bf16.mxu0 0
    %415 = vmatpush1.bf16.msra.mxu0 0
    %416 = vmatprep.subr.bf16.mxu0 0
    %417 = vmatpush1.bf16.msra.mxu0 0
    %418 = vmatprep.subr.bf16.mxu0 0
    %419 = vmatpush1.bf16.msra.mxu0 0
    %420 = vmatprep.subr.bf16.mxu0 0
    %421 = vmatpush1.bf16.msra.mxu0 0
    %422 = vmatprep.subr.bf16.mxu0 0
    %423 = vmatpush1.bf16.msra.mxu0 0
    %424 = vmatprep.subr.bf16.mxu0 0
    %425 = vmatpush1.bf16.msra.mxu0 0
    %426 = vmatprep.mubr.bf16.mxu0 0
    %427 = vmatmul.mubr.bf16.gmra.mrb[0].mxu0 %v292
    %v428 = vpop.f32.mrb[0].mxu0
    %v429 = vadd.f32 %v117, %v428
    %v430 = vpop.f32.mrb[0].mxu0
    %v431 = vpop.f32.mrb[0].mxu0
    %v432 = vadd.f32 %v117, %v431
    %v433 = vpop.f32.mrb[0].mxu0
    %434 = vmatprep.mubr.bf16.mxu0 0
    %435 = vmatmul.mubr.bf16.gmra.mrb[0].mxu0 %v295
    %v436 = vpop.f32.mrb[0].mxu0
    %v437 = vadd.f32 %v117, %v436
    %v438 = vpop.f32.mrb[0].mxu0
    %v439 = vpop.f32.mrb[0].mxu0
    %v440 = vadd.f32 %v117, %v439
    %v441 = vpop.f32.mrb[0].mxu0
    %442 = vmatprep.mubr.bf16.mxu0 0
    %443 = vmatmul.mubr.bf16.gmra.mrb[0].mxu0 %v298
    %v444 = vpop.f32.mrb[0].mxu0
    %v445 = vadd.f32 %v117, %v444
    %v446 = vpop.f32.mrb[0].mxu0
    %v447 = vpop.f32.mrb[0].mxu0
    %v448 = vadd.f32 %v117, %v447
    %v449 = vpop.f32.mrb[0].mxu0
    %450 = vmatprep.mubr.bf16.mxu0 0
    %451 = vmatmul.mubr.bf16.gmra.mrb[0].mxu0 %v301
    %v452 = vpop.f32.mrb[0].mxu0
    %v453 = vadd.f32 %v117, %v452
    %v454 = vpop.f32.mrb[0].mxu0
    %v455 = vpop.f32.mrb[0].mxu0
    %v456 = vadd.f32 %v117, %v455
    %v457 = vpop.f32.mrb[0].mxu0
    %458 = vmatprep.mubr.bf16.mxu0 0
    %459 = vmatmul.mubr.bf16.gmra.mrb[0].mxu0 %v304
    %v460 = vpop.f32.mrb[0].mxu0
    %v461 = vadd.f32 %v117, %v460
    %v462 = vpop.f32.mrb[0].mxu0
    %v463 = vpop.f32.mrb[0].mxu0
    %v464 = vadd.f32 %v117, %v463
    %v465 = vpop.f32.mrb[0].mxu0
    %466 = vmatprep.mubr.bf16.mxu0 0
    %467 = vmatmul.mubr.bf16.gmra.mrb[0].mxu0 %v307
    %v468 = vpop.f32.mrb[0].mxu0
    %v469 = vadd.f32 %v117, %v468
    %v470 = vpop.f32.mrb[0].mxu0
    %v471 = vpop.f32.mrb[0].mxu0
    %v472 = vadd.f32 %v117, %v471
    %v473 = vpop.f32.mrb[0].mxu0
    %474 = vmatprep.mubr.bf16.mxu0 0
    %475 = vmatmul.mubr.bf16.gmra.mrb[0].mxu0 %v310
    %v476 = vpop.f32.mrb[0].mxu0
    %v477 = vadd.f32 %v117, %v476
    %v478 = vpop.f32.mrb[0].mxu0
    %v479 = vpop.f32.mrb[0].mxu0
    %v480 = vadd.f32 %v117, %v479
    %v481 = vpop.f32.mrb[0].mxu0
    %482 = vmatprep.mubr.bf16.mxu0 0
    %483 = vmatmul.mubr.bf16.gmra.mrb[0].mxu0 %v313
    %v484 = vpop.f32.mrb[0].mxu0
    %v485 = vadd.f32 %v117, %v484
    %v486 = vpop.f32.mrb[0].mxu0
    %v487 = vpop.f32.mrb[0].mxu0
    %v488 = vadd.f32 %v117, %v487
    %v489 = vpop.f32.mrb[0].mxu0
    %490 = vmatprep.mubr.bf16.mxu0 0
    %491 = vmatmul.mubr.bf16.gmra.mrb[0].mxu0 %v316
    %v492 = vpop.f32.mrb[0].mxu0
    %v493 = vadd.f32 %v117, %v492
    %v494 = vpop.f32.mrb[0].mxu0
    %v495 = vpop.f32.mrb[0].mxu0
    %v496 = vadd.f32 %v117, %v495
    %v497 = vpop.f32.mrb[0].mxu0
    %498 = vmatprep.mubr.bf16.mxu0 0
    %499 = vmatmul.mubr.bf16.gmra.mrb[0].mxu0 %v319
    %v500 = vpop.f32.mrb[0].mxu0
    %v501 = vadd.f32 %v117, %v500
    %v502 = vpop.f32.mrb[0].mxu0
    %v503 = vpop.f32.mrb[0].mxu0
    %v504 = vadd.f32 %v117, %v503
    %v505 = vpop.f32.mrb[0].mxu0
    %506 = vmatprep.mubr.bf16.mxu0 0
    %507 = vmatmul.mubr.bf16.gmra.mrb[0].mxu0 %v322
    %v508 = vpop.f32.mrb[0].mxu0
    %v509 = vadd.f32 %v117, %v508
    %v510 = vpop.f32.mrb[0].mxu0
    %v511 = vpop.f32.mrb[0].mxu0
    %v512 = vadd.f32 %v117, %v511
    %v513 = vpop.f32.mrb[0].mxu0
    %514 = vmatprep.mubr.bf16.mxu0 0
    %515 = vmatmul.mubr.bf16.gmra.mrb[0].mxu0 %v325
    %v516 = vpop.f32.mrb[0].mxu0
    %v517 = vadd.f32 %v117, %v516
    %v518 = vpop.f32.mrb[0].mxu0
    %v519 = vpop.f32.mrb[0].mxu0
    %v520 = vadd.f32 %v117, %v519
    %v521 = vpop.f32.mrb[0].mxu0
    %522 = vmatprep.mubr.bf16.mxu0 0
    %523 = vmatmul.mubr.bf16.gmra.mrb[0].mxu0 %v328
    %v524 = vpop.f32.mrb[0].mxu0
    %v525 = vadd.f32 %v117, %v524
    %v526 = vpop.f32.mrb[0].mxu0
    %v527 = vpop.f32.mrb[0].mxu0
    %v528 = vadd.f32 %v117, %v527
    %v529 = vpop.f32.mrb[0].mxu0
    %530 = vmatprep.mubr.bf16.mxu0 0
    %531 = vmatmul.mubr.bf16.gmra.mrb[0].mxu0 %v331
    %v532 = vpop.f32.mrb[0].mxu0
    %v533 = vadd.f32 %v117, %v532
    %v534 = vpop.f32.mrb[0].mxu0
    %v535 = vpop.f32.mrb[0].mxu0
    %v536 = vadd.f32 %v117, %v535
    %v537 = vpop.f32.mrb[0].mxu0
    %538 = vmatprep.mubr.bf16.mxu0 0
    %539 = vmatmul.mubr.bf16.gmra.mrb[0].mxu0 %v334
    %v540 = vpop.f32.mrb[0].mxu0
    %v541 = vadd.f32 %v117, %v540
    %v542 = vpop.f32.mrb[0].mxu0
    %v543 = vpop.f32.mrb[0].mxu0
    %v544 = vadd.f32 %v117, %v543
    %v545 = vpop.f32.mrb[0].mxu0
    %546 = vmatprep.mubr.bf16.mxu0 0
    %547 = vmatmul.mubr.bf16.gmra.mrb[0].mxu0 %v337
    %v548 = vpop.f32.mrb[0].mxu0
    %v549 = vadd.f32 %v117, %v548
    %v550 = vpop.f32.mrb[0].mxu0
    %v551 = vpop.f32.mrb[0].mxu0
    %v552 = vadd.f32 %v117, %v551
    %v553 = vpop.f32.mrb[0].mxu0
    %554 = vmatprep.mubr.bf16.mxu0 0
    %555 = vmatmul.mubr.bf16.gmra.mrb[0].mxu0 %v340
    %v556 = vpop.f32.mrb[0].mxu0
    %v557 = vadd.f32 %v117, %v556
    %v558 = vpop.f32.mrb[0].mxu0
    %v559 = vpop.f32.mrb[0].mxu0
    %v560 = vadd.f32 %v117, %v559
    %v561 = vpop.f32.mrb[0].mxu0
    %562 = vmatprep.mubr.bf16.mxu0 0
    %563 = vmatmul.mubr.bf16.gmra.mrb[0].mxu0 %v343
    %v564 = vpop.f32.mrb[0].mxu0
    %v565 = vadd.f32 %v117, %v564
    %v566 = vpop.f32.mrb[0].mxu0
    %v567 = vpop.f32.mrb[0].mxu0
    %v568 = vadd.f32 %v117, %v567
    %v569 = vpop.f32.mrb[0].mxu0
    %570 = vmatprep.mubr.bf16.mxu0 0
    %571 = vmatmul.mubr.bf16.gmra.mrb[0].mxu0 %v346
    %v572 = vpop.f32.mrb[0].mxu0
    %v573 = vadd.f32 %v117, %v572
    %v574 = vpop.f32.mrb[0].mxu0
    %v575 = vpop.f32.mrb[0].mxu0
    %v576 = vadd.f32 %v117, %v575
    %v577 = vpop.f32.mrb[0].mxu0
    %578 = vmatprep.mubr.bf16.mxu0 0
    %579 = vmatmul.mubr.bf16.gmra.mrb[0].mxu0 %v349
    %v580 = vpop.f32.mrb[0].mxu0
    %v581 = vadd.f32 %v117, %v580
    %v582 = vpop.f32.mrb[0].mxu0
    %v583 = vpop.f32.mrb[0].mxu0
    %v584 = vadd.f32 %v117, %v583
    %v585 = vpop.f32.mrb[0].mxu0
    %586 = vmatprep.mubr.bf16.mxu0 0
    %587 = vmatmul.mubr.bf16.gmra.mrb[0].mxu0 %v352
    %v588 = vpop.f32.mrb[0].mxu0
    %v589 = vadd.f32 %v117, %v588
    %v590 = vpop.f32.mrb[0].mxu0
    %v591 = vpop.f32.mrb[0].mxu0
    %v592 = vadd.f32 %v117, %v591
    %v593 = vpop.f32.mrb[0].mxu0
    %594 = vmatprep.mubr.bf16.mxu0 0
    %595 = vmatmul.mubr.bf16.gmra.mrb[0].mxu0 %v355
    %v596 = vpop.f32.mrb[0].mxu0
    %v597 = vadd.f32 %v117, %v596
    %v598 = vpop.f32.mrb[0].mxu0
    %v599 = vpop.f32.mrb[0].mxu0
    %v600 = vadd.f32 %v117, %v599
    %v601 = vpop.f32.mrb[0].mxu0
    %602 = vmatprep.mubr.bf16.mxu0 0
    %603 = vmatmul.mubr.bf16.gmra.mrb[0].mxu0 %v358
    %v604 = vpop.f32.mrb[0].mxu0
    %v605 = vadd.f32 %v117, %v604
    %v606 = vpop.f32.mrb[0].mxu0
    %v607 = vpop.f32.mrb[0].mxu0
    %v608 = vadd.f32 %v117, %v607
    %v609 = vpop.f32.mrb[0].mxu0
    %610 = vmatprep.mubr.bf16.mxu0 0
    %611 = vmatmul.mubr.bf16.gmra.mrb[0].mxu0 %v361
    %v612 = vpop.f32.mrb[0].mxu0
    %v613 = vadd.f32 %v117, %v612
    %v614 = vpop.f32.mrb[0].mxu0
    %v615 = vpop.f32.mrb[0].mxu0
    %v616 = vadd.f32 %v117, %v615
    %v617 = vpop.f32.mrb[0].mxu0
    %618 = vmatprep.mubr.bf16.mxu0 0
    %619 = vmatmul.mubr.bf16.gmra.mrb[0].mxu0 %v364
    %v620 = vpop.f32.mrb[0].mxu0
    %v621 = vadd.f32 %v117, %v620
    %v622 = vpop.f32.mrb[0].mxu0
    %v623 = vpop.f32.mrb[0].mxu0
    %v624 = vadd.f32 %v117, %v623
    %v625 = vpop.f32.mrb[0].mxu0
    %626 = vmatprep.mubr.bf16.mxu0 0
    %627 = vmatmul.mubr.bf16.gmra.mrb[0].mxu0 %v367
    %v628 = vpop.f32.mrb[0].mxu0
    %v629 = vadd.f32 %v117, %v628
    %v630 = vpop.f32.mrb[0].mxu0
    %v631 = vpop.f32.mrb[0].mxu0
    %v632 = vadd.f32 %v117, %v631
    %v633 = vpop.f32.mrb[0].mxu0
    %634 = vmatprep.mubr.bf16.mxu0 0
    %635 = vmatmul.mubr.bf16.gmra.mrb[0].mxu0 %v370
    %v636 = vpop.f32.mrb[0].mxu0
    %v637 = vadd.f32 %v117, %v636
    %v638 = vpop.f32.mrb[0].mxu0
    %v639 = vpop.f32.mrb[0].mxu0
    %v640 = vadd.f32 %v117, %v639
    %v641 = vpop.f32.mrb[0].mxu0
    %642 = vmatprep.mubr.bf16.mxu0 0
    %643 = vmatmul.mubr.bf16.gmra.mrb[0].mxu0 %v373
    %v644 = vpop.f32.mrb[0].mxu0
    %v645 = vadd.f32 %v117, %v644
    %v646 = vpop.f32.mrb[0].mxu0
    %v647 = vpop.f32.mrb[0].mxu0
    %v648 = vadd.f32 %v117, %v647
    %v649 = vpop.f32.mrb[0].mxu0
    %650 = vmatprep.mubr.bf16.mxu0 0
    %651 = vmatmul.mubr.bf16.gmra.mrb[0].mxu0 %v376
    %v652 = vpop.f32.mrb[0].mxu0
    %v653 = vadd.f32 %v117, %v652
    %v654 = vpop.f32.mrb[0].mxu0
    %v655 = vpop.f32.mrb[0].mxu0
    %v656 = vadd.f32 %v117, %v655
    %v657 = vpop.f32.mrb[0].mxu0
    %658 = vmatprep.mubr.bf16.mxu0 0
    %659 = vmatmul.mubr.bf16.gmra.mrb[0].mxu0 %v379
    %v660 = vpop.f32.mrb[0].mxu0
    %v661 = vadd.f32 %v117, %v660
    %v662 = vpop.f32.mrb[0].mxu0
    %v663 = vpop.f32.mrb[0].mxu0
    %v664 = vadd.f32 %v117, %v663
    %v665 = vpop.f32.mrb[0].mxu0
    %666 = vmatprep.mubr.bf16.mxu0 0
    %667 = vmatmul.mubr.bf16.gmra.mrb[0].mxu0 %v382
    %v668 = vpop.f32.mrb[0].mxu0
    %v669 = vadd.f32 %v117, %v668
    %v670 = vpop.f32.mrb[0].mxu0
    %v671 = vpop.f32.mrb[0].mxu0
    %v672 = vadd.f32 %v117, %v671
    %v673 = vpop.f32.mrb[0].mxu0
    %674 = vmatprep.mubr.bf16.mxu0 0
    %675 = vmatmul.mubr.bf16.gmra.mrb[0].mxu0 %v385
    %v676 = vpop.f32.mrb[0].mxu0
    %v677 = vadd.f32 %v117, %v676
    %v678 = vpop.f32.mrb[0].mxu0
    %v679 = vpop.f32.mrb[0].mxu0
    %v680 = vadd.f32 %v117, %v679
    %v681 = vpop.f32.mrb[0].mxu0
    %682 = vdwg.mxu0
    %v683 = vmax.f32 %v429, 0.0
    %v684 = vmax.f32 %v432, 0.0
    %v685 = vmax.f32 %v437, 0.0
    %v686 = vmax.f32 %v440, 0.0
    %v687 = vmax.f32 %v445, 0.0
    %v688 = vmax.f32 %v448, 0.0
    %v689 = vmax.f32 %v453, 0.0
    %v690 = vmax.f32 %v456, 0.0
    %v691 = vmax.f32 %v461, 0.0
    %v692 = vmax.f32 %v464, 0.0
    %v693 = vmax.f32 %v469, 0.0
    %v694 = vmax.f32 %v472, 0.0
    %v695 = vmax.f32 %v477, 0.0
    %v696 = vmax.f32 %v480, 0.0
    %v697 = vmax.f32 %v485, 0.0
    %v698 = vmax.f32 %v488, 0.0
    %v699 = vmax.f32 %v493, 0.0
    %v700 = vmax.f32 %v496, 0.0
    %v701 = vmax.f32 %v501, 0.0
    %v702 = vmax.f32 %v504, 0.0
    %v703 = vmax.f32 %v509, 0.0
    %v704 = vmax.f32 %v512, 0.0
    %v705 = vmax.f32 %v517, 0.0
    %v706 = vmax.f32 %v520, 0.0
    %v707 = vmax.f32 %v525, 0.0
    %v708 = vmax.f32 %v528, 0.0
    %v709 = vmax.f32 %v533, 0.0
    %v710 = vmax.f32 %v536, 0.0
    %v711 = vmax.f32 %v541, 0.0
    %v712 = vmax.f32 %v544, 0.0
    %v713 = vmax.f32 %v549, 0.0
    %v714 = vmax.f32 %v552, 0.0
    %v715 = vmax.f32 %v557, 0.0
    %v716 = vmax.f32 %v560, 0.0
    %v717 = vmax.f32 %v565, 0.0
    %v718 = vmax.f32 %v568, 0.0
    %v719 = vmax.f32 %v573, 0.0
    %v720 = vmax.f32 %v576, 0.0
    %v721 = vmax.f32 %v581, 0.0
    %v722 = vmax.f32 %v584, 0.0
    %v723 = vmax.f32 %v589, 0.0
    %v724 = vmax.f32 %v592, 0.0
    %v725 = vmax.f32 %v597, 0.0
    %v726 = vmax.f32 %v600, 0.0
    %v727 = vmax.f32 %v605, 0.0
    %v728 = vmax.f32 %v608, 0.0
    %v729 = vmax.f32 %v613, 0.0
    %v730 = vmax.f32 %v616, 0.0
    %v731 = vmax.f32 %v621, 0.0
    %v732 = vmax.f32 %v624, 0.0
    %v733 = vmax.f32 %v629, 0.0
    %v734 = vmax.f32 %v632, 0.0
    %v735 = vmax.f32 %v637, 0.0
    %v736 = vmax.f32 %v640, 0.0
    %v737 = vmax.f32 %v645, 0.0
    %v738 = vmax.f32 %v648, 0.0
    %v739 = vmax.f32 %v653, 0.0
    %v740 = vmax.f32 %v656, 0.0
    %v741 = vmax.f32 %v661, 0.0
    %v742 = vmax.f32 %v664, 0.0
    %v743 = vmax.f32 %v669, 0.0
    %v744 = vmax.f32 %v672, 0.0
    %v745 = vmax.f32 %v677, 0.0
    %v746 = vmax.f32 %v680, 0.0
    %v747 = vpack.c.bf16 %v684, %v683
    %v748 = vpack.c.bf16 %v686, %v685
    %v749 = vpack.c.bf16 %v688, %v687
    %v750 = vpack.c.bf16 %v690, %v689
    %v751 = vpack.c.bf16 %v692, %v691
    %v752 = vpack.c.bf16 %v694, %v693
    %v753 = vpack.c.bf16 %v696, %v695
    %v754 = vpack.c.bf16 %v698, %v697
    %v755 = vpack.c.bf16 %v700, %v699
    %v756 = vpack.c.bf16 %v702, %v701
    %v757 = vpack.c.bf16 %v704, %v703
    %v758 = vpack.c.bf16 %v706, %v705
    %v759 = vpack.c.bf16 %v708, %v707
    %v760 = vpack.c.bf16 %v710, %v709
    %v761 = vpack.c.bf16 %v712, %v711
    %v762 = vpack.c.bf16 %v714, %v713
    %v763 = vpack.c.bf16 %v716, %v715
    %v764 = vpack.c.bf16 %v718, %v717
    %v765 = vpack.c.bf16 %v720, %v719
    %v766 = vpack.c.bf16 %v722, %v721
    %v767 = vpack.c.bf16 %v724, %v723
    %v768 = vpack.c.bf16 %v726, %v725
    %v769 = vpack.c.bf16 %v728, %v727
    %v770 = vpack.c.bf16 %v730, %v729
    %v771 = vpack.c.bf16 %v732, %v731
    %v772 = vpack.c.bf16 %v734, %v733
    %v773 = vpack.c.bf16 %v736, %v735
    %v774 = vpack.c.bf16 %v738, %v737
    %v775 = vpack.c.bf16 %v740, %v739
    %v776 = vpack.c.bf16 %v742, %v741
    %v777 = vpack.c.bf16 %v744, %v743
    %v778 = vpack.c.bf16 %v746, %v745
    %v811 = vunpack.c.l.b16 %v747
    %v812 = vunpack.c.h.b16 %v747
    %v813 = vunpack.c.l.b16 %v748
    %v814 = vunpack.c.h.b16 %v748
    %v815 = vunpack.c.l.b16 %v749
    %v816 = vunpack.c.h.b16 %v749
    %v817 = vunpack.c.l.b16 %v750
    %v818 = vunpack.c.h.b16 %v750
    %v819 = vunpack.c.l.b16 %v751
    %v820 = vunpack.c.h.b16 %v751
    %v821 = vunpack.c.l.b16 %v752
    %v822 = vunpack.c.h.b16 %v752
    %v823 = vunpack.c.l.b16 %v753
    %v824 = vunpack.c.h.b16 %v753
    %v825 = vunpack.c.l.b16 %v754
    %v826 = vunpack.c.h.b16 %v754
    %v827 = vunpack.c.l.b16 %v755
    %v828 = vunpack.c.h.b16 %v755
    %v829 = vunpack.c.l.b16 %v756
    %v830 = vunpack.c.h.b16 %v756
    %v831 = vunpack.c.l.b16 %v757
    %v832 = vunpack.c.h.b16 %v757
    %v833 = vunpack.c.l.b16 %v758
    %v834 = vunpack.c.h.b16 %v758
    %v835 = vunpack.c.l.b16 %v759
    %v836 = vunpack.c.h.b16 %v759
    %v837 = vunpack.c.l.b16 %v760
    %v838 = vunpack.c.h.b16 %v760
    %v839 = vunpack.c.l.b16 %v761
    %v840 = vunpack.c.h.b16 %v761
    %v841 = vunpack.c.l.b16 %v762
    %v842 = vunpack.c.h.b16 %v762
    %v843 = vunpack.c.l.b16 %v763
    %v844 = vunpack.c.h.b16 %v763
    %v845 = vunpack.c.l.b16 %v764
    %v846 = vunpack.c.h.b16 %v764
    %v847 = vunpack.c.l.b16 %v765
    %v848 = vunpack.c.h.b16 %v765
    %v849 = vunpack.c.l.b16 %v766
    %v850 = vunpack.c.h.b16 %v766
    %v851 = vunpack.c.l.b16 %v767
    %v852 = vunpack.c.h.b16 %v767
    %v853 = vunpack.c.l.b16 %v768
    %v854 = vunpack.c.h.b16 %v768
    %v855 = vunpack.c.l.b16 %v769
    %v856 = vunpack.c.h.b16 %v769
    %v857 = vunpack.c.l.b16 %v770
    %v858 = vunpack.c.h.b16 %v770
    %v859 = vunpack.c.l.b16 %v771
    %v860 = vunpack.c.h.b16 %v771
    %v861 = vunpack.c.l.b16 %v772
    %v862 = vunpack.c.h.b16 %v772
    %v863 = vunpack.c.l.b16 %v773
    %v864 = vunpack.c.h.b16 %v773
    %v865 = vunpack.c.l.b16 %v774
    %v866 = vunpack.c.h.b16 %v774
    %v867 = vunpack.c.l.b16 %v775
    %v868 = vunpack.c.h.b16 %v775
    %v869 = vunpack.c.l.b16 %v776
    %v870 = vunpack.c.h.b16 %v776
    %v871 = vunpack.c.l.b16 %v777
    %v872 = vunpack.c.h.b16 %v777
    %v873 = vunpack.c.l.b16 %v778
    %v874 = vunpack.c.h.b16 %v778
    %v875 = vpack.c.b16 %v811, %v811
    %v876 = vpack.c.b16 %v812, %v812
    %v877 = vpack.c.b16 %v813, %v813
    %v878 = vpack.c.b16 %v814, %v814
    %v879 = vpack.c.b16 %v815, %v815
    %v880 = vpack.c.b16 %v816, %v816
    %v881 = vpack.c.b16 %v817, %v817
    %v882 = vpack.c.b16 %v818, %v818
    %v883 = vpack.c.b16 %v819, %v819
    %v884 = vpack.c.b16 %v820, %v820
    %v885 = vpack.c.b16 %v821, %v821
    %v886 = vpack.c.b16 %v822, %v822
    %v887 = vpack.c.b16 %v823, %v823
    %v888 = vpack.c.b16 %v824, %v824
    %v889 = vpack.c.b16 %v825, %v825
    %v890 = vpack.c.b16 %v826, %v826
    %v891 = vpack.c.b16 %v827, %v827
    %v892 = vpack.c.b16 %v828, %v828
    %v893 = vpack.c.b16 %v829, %v829
    %v894 = vpack.c.b16 %v830, %v830
    %v895 = vpack.c.b16 %v831, %v831
    %v896 = vpack.c.b16 %v832, %v832
    %v897 = vpack.c.b16 %v833, %v833
    %v898 = vpack.c.b16 %v834, %v834
    %v899 = vpack.c.b16 %v835, %v835
    %v900 = vpack.c.b16 %v836, %v836
    %v901 = vpack.c.b16 %v837, %v837
    %v902 = vpack.c.b16 %v838, %v838
    %v903 = vpack.c.b16 %v839, %v839
    %v904 = vpack.c.b16 %v840, %v840
    %v905 = vpack.c.b16 %v841, %v841
    %v906 = vpack.c.b16 %v842, %v842
    %v907 = vpack.c.b16 %v843, %v843
    %v908 = vpack.c.b16 %v844, %v844
    %v909 = vpack.c.b16 %v845, %v845
    %v910 = vpack.c.b16 %v846, %v846
    %v911 = vpack.c.b16 %v847, %v847
    %v912 = vpack.c.b16 %v848, %v848
    %v913 = vpack.c.b16 %v849, %v849
    %v914 = vpack.c.b16 %v850, %v850
    %v915 = vpack.c.b16 %v851, %v851
    %v916 = vpack.c.b16 %v852, %v852
    %v917 = vpack.c.b16 %v853, %v853
    %v918 = vpack.c.b16 %v854, %v854
    %v919 = vpack.c.b16 %v855, %v855
    %v920 = vpack.c.b16 %v856, %v856
    %v921 = vpack.c.b16 %v857, %v857
    %v922 = vpack.c.b16 %v858, %v858
    %v923 = vpack.c.b16 %v859, %v859
    %v924 = vpack.c.b16 %v860, %v860
    %v925 = vpack.c.b16 %v861, %v861
    %v926 = vpack.c.b16 %v862, %v862
    %v927 = vpack.c.b16 %v863, %v863
    %v928 = vpack.c.b16 %v864, %v864
    %v929 = vpack.c.b16 %v865, %v865
    %v930 = vpack.c.b16 %v866, %v866
    %v931 = vpack.c.b16 %v867, %v867
    %v932 = vpack.c.b16 %v868, %v868
    %v933 = vpack.c.b16 %v869, %v869
    %v934 = vpack.c.b16 %v870, %v870
    %v935 = vpack.c.b16 %v871, %v871
    %v936 = vpack.c.b16 %v872, %v872
    %v937 = vpack.c.b16 %v873, %v873
    %v938 = vpack.c.b16 %v874, %v874
    %vm1003 = vcmask 519168
    %1004 = vst.msk [vmem:[#allocation7] sm:$0xf] %vm1003, %v875
    %1005 = vst.msk [vmem:[#allocation7 + $0x4] sm:$0xf] %vm1003, %v876
    %1006 = vst.msk [vmem:[#allocation7 + $0x8] sm:$0xf] %vm1003, %v877
    %1007 = vst.msk [vmem:[#allocation7 + $0xc] sm:$0xf] %vm1003, %v878
    %1008 = vst.msk [vmem:[#allocation7 + $0x10] sm:$0xf] %vm1003, %v879
    %1009 = vst.msk [vmem:[#allocation7 + $0x14] sm:$0xf] %vm1003, %v880
    %1010 = vst.msk [vmem:[#allocation7 + $0x18] sm:$0xf] %vm1003, %v881
    %1011 = vst.msk [vmem:[#allocation7 + $0x1c] sm:$0xf] %vm1003, %v882
    %1012 = vst.msk [vmem:[#allocation7 + $0x20] sm:$0xf] %vm1003, %v883
    %1013 = vst.msk [vmem:[#allocation7 + $0x24] sm:$0xf] %vm1003, %v884
    %1014 = vst.msk [vmem:[#allocation7 + $0x28] sm:$0xf] %vm1003, %v885
    %1015 = vst.msk [vmem:[#allocation7 + $0x2c] sm:$0xf] %vm1003, %v886
    %1016 = vst.msk [vmem:[#allocation7 + $0x30] sm:$0xf] %vm1003, %v887
    %1017 = vst.msk [vmem:[#allocation7 + $0x34] sm:$0xf] %vm1003, %v888
    %1018 = vst.msk [vmem:[#allocation7 + $0x38] sm:$0xf] %vm1003, %v889
    %1019 = vst.msk [vmem:[#allocation7 + $0x3c] sm:$0xf] %vm1003, %v890
    %1020 = vst.msk [vmem:[#allocation7 + $0x40] sm:$0xf] %vm1003, %v891
    %1021 = vst.msk [vmem:[#allocation7 + $0x44] sm:$0xf] %vm1003, %v892
    %1022 = vst.msk [vmem:[#allocation7 + $0x48] sm:$0xf] %vm1003, %v893
    %1023 = vst.msk [vmem:[#allocation7 + $0x4c] sm:$0xf] %vm1003, %v894
    %1024 = vst.msk [vmem:[#allocation7 + $0x50] sm:$0xf] %vm1003, %v895
    %1025 = vst.msk [vmem:[#allocation7 + $0x54] sm:$0xf] %vm1003, %v896
    %1026 = vst.msk [vmem:[#allocation7 + $0x58] sm:$0xf] %vm1003, %v897
    %1027 = vst.msk [vmem:[#allocation7 + $0x5c] sm:$0xf] %vm1003, %v898
    %1028 = vst.msk [vmem:[#allocation7 + $0x60] sm:$0xf] %vm1003, %v899
    %1029 = vst.msk [vmem:[#allocation7 + $0x64] sm:$0xf] %vm1003, %v900
    %1030 = vst.msk [vmem:[#allocation7 + $0x68] sm:$0xf] %vm1003, %v901
    %1031 = vst.msk [vmem:[#allocation7 + $0x6c] sm:$0xf] %vm1003, %v902
    %1032 = vst.msk [vmem:[#allocation7 + $0x70] sm:$0xf] %vm1003, %v903
    %1033 = vst.msk [vmem:[#allocation7 + $0x74] sm:$0xf] %vm1003, %v904
    %1034 = vst.msk [vmem:[#allocation7 + $0x78] sm:$0xf] %vm1003, %v905
    %1035 = vst.msk [vmem:[#allocation7 + $0x7c] sm:$0xf] %vm1003, %v906
    %1036 = vst.msk [vmem:[#allocation7 + $0x80] sm:$0xf] %vm1003, %v907
    %1037 = vst.msk [vmem:[#allocation7 + $0x84] sm:$0xf] %vm1003, %v908
    %1038 = vst.msk [vmem:[#allocation7 + $0x88] sm:$0xf] %vm1003, %v909
    %1039 = vst.msk [vmem:[#allocation7 + $0x8c] sm:$0xf] %vm1003, %v910
    %1040 = vst.msk [vmem:[#allocation7 + $0x90] sm:$0xf] %vm1003, %v911
    %1041 = vst.msk [vmem:[#allocation7 + $0x94] sm:$0xf] %vm1003, %v912
    %1042 = vst.msk [vmem:[#allocation7 + $0x98] sm:$0xf] %vm1003, %v913
    %1043 = vst.msk [vmem:[#allocation7 + $0x9c] sm:$0xf] %vm1003, %v914
    %1044 = vst.msk [vmem:[#allocation7 + $0xa0] sm:$0xf] %vm1003, %v915
    %1045 = vst.msk [vmem:[#allocation7 + $0xa4] sm:$0xf] %vm1003, %v916
    %1046 = vst.msk [vmem:[#allocation7 + $0xa8] sm:$0xf] %vm1003, %v917
    %1047 = vst.msk [vmem:[#allocation7 + $0xac] sm:$0xf] %vm1003, %v918
    %1048 = vst.msk [vmem:[#allocation7 + $0xb0] sm:$0xf] %vm1003, %v919
    %1049 = vst.msk [vmem:[#allocation7 + $0xb4] sm:$0xf] %vm1003, %v920
    %1050 = vst.msk [vmem:[#allocation7 + $0xb8] sm:$0xf] %vm1003, %v921
    %1051 = vst.msk [vmem:[#allocation7 + $0xbc] sm:$0xf] %vm1003, %v922
    %1052 = vst.msk [vmem:[#allocation7 + $0xc0] sm:$0xf] %vm1003, %v923
    %1053 = vst.msk [vmem:[#allocation7 + $0xc4] sm:$0xf] %vm1003, %v924
    %1054 = vst.msk [vmem:[#allocation7 + $0xc8] sm:$0xf] %vm1003, %v925
    %1055 = vst.msk [vmem:[#allocation7 + $0xcc] sm:$0xf] %vm1003, %v926
    %1056 = vst.msk [vmem:[#allocation7 + $0xd0] sm:$0xf] %vm1003, %v927
    %1057 = vst.msk [vmem:[#allocation7 + $0xd4] sm:$0xf] %vm1003, %v928
    %1058 = vst.msk [vmem:[#allocation7 + $0xd8] sm:$0xf] %vm1003, %v929
    %1059 = vst.msk [vmem:[#allocation7 + $0xdc] sm:$0xf] %vm1003, %v930
    %1060 = vst.msk [vmem:[#allocation7 + $0xe0] sm:$0xf] %vm1003, %v931
    %1061 = vst.msk [vmem:[#allocation7 + $0xe4] sm:$0xf] %vm1003, %v932
    %1062 = vst.msk [vmem:[#allocation7 + $0xe8] sm:$0xf] %vm1003, %v933
    %1063 = vst.msk [vmem:[#allocation7 + $0xec] sm:$0xf] %vm1003, %v934
    %1064 = vst.msk [vmem:[#allocation7 + $0xf0] sm:$0xf] %vm1003, %v935
    %1065 = vst.msk [vmem:[#allocation7 + $0xf4] sm:$0xf] %vm1003, %v936
    %1066 = vst.msk [vmem:[#allocation7 + $0xf8] sm:$0xf] %vm1003, %v937
    %1067 = vst.msk [vmem:[#allocation7 + $0xfc] sm:$0xf] %vm1003, %v938
    // Predicated region
    $region22: #{tpu_custom_call.1} parent=1 // pred_check
      _
    $region23: #{tpu_custom_call.1} parent=1 // pred_check_branch
      %1069 = sbr.rel (0) target = $region25
    $region24: #{tpu_custom_call.1} parent=1 // pred_region
      %s1071 = ssub.s32 4096, 4096
      %1072 = vsyncadd [#allocation4], %s1071
      %s1073 = sshll.u32 [#allocation7], 4
      %s1074 = int_to_ptr.vmem [resolvable:$true] %s1073
      %1079 = dma.vmem_to_hbm [thread:$0]  %s1074, 4096, %s3, [#allocation4], 64, 64, 4
    $region25: #{tpu_custom_call.1} parent=1 // pred_fallthru
      _
    // Predicated region
    $region26: #{tpu_custom_call.1} parent=1 // pred_check
      _
    $region27: #{tpu_custom_call.1} parent=1 // pred_check_branch
      %1081 = sbr.rel (0) target = $region29
    $region28: #{tpu_custom_call.1} parent=1 // pred_region
      %1082 = dma.done [#allocation4], 4096
    $region29: #{tpu_custom_call.1} parent=1 // pred_fallthru
      _
    %1083 = vsyncpa [#allocation3], 1
    %1084 = vsyncpa [#allocation6], 1
    %1085 = vsyncpa [#allocation4], 1

</llo_original>
